<compile_context>
chip_gen: v6e
topology: v6e:2x2x1
jax: 0.10.0
libtpu: 0.0.40
codegen_flags: <defaults>
</compile_context>

<pallas_src>
import functools

import jax
import jax.numpy as jnp
from jax.experimental import pallas as pl
from jax.experimental.pallas import tpu as pltpu


# ----------------------------- helpers ---------------------------------------

def _round_up(v, m):
    return ((v + m - 1) // m) * m


def _pad2d(x, rows, cols, fill=0.0):
    return jnp.pad(x, ((0, rows - x.shape[0]), (0, cols - x.shape[1])),
                   constant_values=fill)


def _sum_all(x):
    # (R, C) -> (1, 1); lane reduce then sublane reduce (both XLU-friendly).
    return jnp.sum(jnp.sum(x, axis=1, keepdims=True), axis=0, keepdims=True)


# ----------------------------- Pallas kernels --------------------------------

def _bce_loss_kernel(x_ref, y_ref, o_ref, sum_ref, cnt_ref, *,
                     n_rows, n_cols, tile_rows, use_nan_mask):
    """Binary cross-entropy with logits, mean over valid elements.

    valid = in-bounds element  [&  target == target  if use_nan_mask]
    """
    i = pl.program_id(0)

    @pl.when(i == 0)
    def _():
        sum_ref[...] = jnp.zeros_like(sum_ref)
        cnt_ref[...] = jnp.zeros_like(cnt_ref)

    x = x_ref[...]                                   # (tile_rows, C_pad) f32
    y = y_ref[...]                                   # (tile_rows, C_pad) f32

    row_idx = i * tile_rows + jax.lax.broadcasted_iota(jnp.int32, x.shape, 0)
    col_idx = jax.lax.broadcasted_iota(jnp.int32, x.shape, 1)
    valid = (row_idx < n_rows) & (col_idx < n_cols)
    if use_nan_mask:
        valid = valid & (y == y)                     # targets == targets (non-NaN)

    x_safe = jnp.where(valid, x, 0.0)
    y_safe = jnp.where(valid, y, 0.0)

    # Stable BCE-with-logits: max(x,0) - x*y + log(1 + exp(-|x|))
    per_elem = (jnp.maximum(x_safe, 0.0) - x_safe * y_safe
                + jnp.log(1.0 + jnp.exp(-jnp.abs(x_safe))))
    per_elem = jnp.where(valid, per_elem, 0.0)

    sum_ref[...] += _sum_all(per_elem)
    cnt_ref[...] += _sum_all(valid.astype(jnp.float32))

    @pl.when(i == pl.num_programs(0) - 1)
    def _():
        o_ref[...] = sum_ref[...] / cnt_ref[...]


def _ce_loss_kernel(x_ref, oh_ref, o_ref, sum_ref, *,
                    n_rows, n_cols, tile_rows):
    """Cross entropy (mean over rows): logsumexp(logits) - logits[target]."""
    i = pl.program_id(0)

    @pl.when(i == 0)
    def _():
        sum_ref[...] = jnp.zeros_like(sum_ref)

    x = x_ref[...]                                   # (tile_rows, C_pad) f32
    t = oh_ref[...]                                  # (tile_rows, C_pad) one-hot f32

    col_idx = jax.lax.broadcasted_iota(jnp.int32, x.shape, 1)
    col_valid = col_idx < n_cols
    row_valid = (i * tile_rows
                 + jax.lax.broadcasted_iota(jnp.int32, (tile_rows, 1), 0)) < n_rows

    neg_big = jnp.float32(-1e30)
    x_m = jnp.where(col_valid, x, neg_big)
    m = jnp.max(x_m, axis=-1, keepdims=True)                       # (T, 1)
    e = jnp.where(col_valid, jnp.exp(x_m - m), 0.0)
    lse = m + jnp.log(jnp.sum(e, axis=-1, keepdims=True))          # (T, 1)
    picked = jnp.sum(x * t, axis=-1, keepdims=True)                # (T, 1)
    per_row = jnp.where(row_valid, lse - picked, 0.0)              # (T, 1)

    sum_ref[...] += jnp.sum(per_row, axis=0, keepdims=True)

    @pl.when(i == pl.num_programs(0) - 1)
    def _():
        o_ref[...] = sum_ref[...] / jnp.float32(n_rows)


# ----------------------------- wrappers ---------------------------------------

def _tile_rows_for(n_rows, tile_rows):
    tb = min(_round_up(n_rows, 8), _round_up(tile_rows, 8))
    return tb, _round_up(n_rows, tb)


def bce_with_logits_loss(logits, targets, *, use_nan_mask, tile_rows=256):
    logits = jnp.asarray(logits, jnp.float32)
    targets = jnp.asarray(targets, jnp.float32).reshape(logits.shape)
    B, C = logits.shape
    C_pad = _round_up(C, 128)
    tb, B_pad = _tile_rows_for(B, tile_rows)

    x_p = _pad2d(logits, B_pad, C_pad)
    y_p = _pad2d(targets, B_pad, C_pad)

    kernel = functools.partial(_bce_loss_kernel, n_rows=B, n_cols=C,
                               tile_rows=tb, use_nan_mask=use_nan_mask)
    out = pl.pallas_call(
        kernel,
        out_shape=jax.ShapeDtypeStruct((1, 1), jnp.float32),
        grid=(B_pad // tb,),
        in_specs=[pl.BlockSpec((tb, C_pad), lambda i: (i, 0)),
                  pl.BlockSpec((tb, C_pad), lambda i: (i, 0))],
        out_specs=pl.BlockSpec((1, 1), lambda i: (0, 0)),
        scratch_shapes=[pltpu.VMEM((1, 1), jnp.float32),
                        pltpu.VMEM((1, 1), jnp.float32)],
        compiler_params=pltpu.CompilerParams(dimension_semantics=("arbitrary",)),
    )(x_p, y_p)
    return out[0, 0]


def cross_entropy_loss(logits, targets, *, tile_rows=256):
    logits = jnp.asarray(logits, jnp.float32)
    targets = jnp.asarray(targets, jnp.int32).reshape(-1)
    B, C = logits.shape
    C_pad = _round_up(C, 128)
    tb, B_pad = _tile_rows_for(B, tile_rows)

    x_p = _pad2d(logits, B_pad, C_pad)
    onehot = jax.nn.one_hot(targets, C_pad, dtype=jnp.float32)      # (B, C_pad)
    oh_p = jnp.pad(onehot, ((0, B_pad - B), (0, 0)))

    kernel = functools.partial(_ce_loss_kernel, n_rows=B, n_cols=C, tile_rows=tb)
    out = pl.pallas_call(
        kernel,
        out_shape=jax.ShapeDtypeStruct((1, 1), jnp.float32),
        grid=(B_pad // tb,),
        in_specs=[pl.BlockSpec((tb, C_pad), lambda i: (i, 0)),
                  pl.BlockSpec((tb, C_pad), lambda i: (i, 0))],
        out_specs=pl.BlockSpec((1, 1), lambda i: (0, 0)),
        scratch_shapes=[pltpu.VMEM((1, 1), jnp.float32)],
        compiler_params=pltpu.CompilerParams(dimension_semantics=("arbitrary",)),
    )(x_p, oh_p)
    return out[0, 0]


def criterion_forward(logits, targets, *, num_class, multi_label, tile_rows=256):
    """JAX/Pallas equivalent of Criterion.forward (branch chosen statically)."""
    if num_class == 2 and (not multi_label):
        return bce_with_logits_loss(logits, targets, use_nan_mask=False,
                                    tile_rows=tile_rows)
    elif num_class > 2 and (not multi_label):
        return cross_entropy_loss(logits, targets, tile_rows=tile_rows)
    else:
        return bce_with_logits_loss(logits, targets, use_nan_mask=True,
                                    tile_rows=tile_rows)


# ----------------------------- pure-JAX references ----------------------------

def _ref_bce(logits, targets):
    x, y = logits, targets
    per = jnp.maximum(x, 0.0) - x * y + jnp.log1p(jnp.exp(-jnp.abs(x)))
    return jnp.mean(per)


def _ref_ce(logits, targets):
    lse = jax.scipy.special.logsumexp(logits, axis=-1)
    picked = jnp.take_along_axis(logits, targets[:, None], axis=-1)[:, 0]
    return jnp.mean(lse - picked)


def _ref_masked_bce(logits, targets):
    mask = targets == targets
    y = jnp.where(mask, targets, 0.0)
    per = jnp.maximum(logits, 0.0) - logits * y + jnp.log1p(jnp.exp(-jnp.abs(logits)))
    return jnp.sum(jnp.where(mask, per, 0.0)) / jnp.sum(mask.astype(jnp.float32))


# ----------------------------- main -------------------------------------------

if __name__ == "__main__":
    key = jax.random.PRNGKey(0)
    k1, k2, k3, k4, k5, k6, k7 = jax.random.split(key, 7)

    B = 32                     # small tile_rows=8 below -> 4-step reduction grid

    # Branch 1: num_class == 2, not multi_label  (binary BCE-with-logits)
    logits_bin = jax.random.normal(k1, (B, 1), jnp.float32)
    targets_bin = jax.random.bernoulli(k2, 0.5, (B, 1)).astype(jnp.float32)
    f_bin = jax.jit(functools.partial(criterion_forward, num_class=2,
                                      multi_label=False, tile_rows=8))
    loss_bin = f_bin(logits_bin, targets_bin)

    # Branch 2: num_class > 2, not multi_label   (cross entropy)
    C = 3
    logits_ce = jax.random.normal(k3, (B, C), jnp.float32)
    targets_ce = jax.random.randint(k4, (B,), 0, C).astype(jnp.int32)
    f_ce = jax.jit(functools.partial(criterion_forward, num_class=C,
                                     multi_label=False, tile_rows=8))
    loss_ce = f_ce(logits_ce, targets_ce)

    # Branch 3: multi_label                      (masked BCE over non-NaN targets)
    CM = 5
    logits_ml = jax.random.normal(k5, (B, CM), jnp.float32)
    t_ml = jax.random.bernoulli(k6, 0.5, (B, CM)).astype(jnp.float32)
    nan_mask = jax.random.bernoulli(k7, 0.25, (B, CM))
    targets_ml = jnp.where(nan_mask, jnp.nan, t_ml)
    f_ml = jax.jit(functools.partial(criterion_forward, num_class=CM,
                                     multi_label=True, tile_rows=8))
    loss_ml = f_ml(logits_ml, targets_ml)

    loss_bin, loss_ce, loss_ml = jax.block_until_ready((loss_bin, loss_ce, loss_ml))

    # correctness vs pure-JAX references
    ref_bin = _ref_bce(logits_bin, targets_bin)
    ref_ce = _ref_ce(logits_ce, targets_ce)
    ref_ml = _ref_masked_bce(logits_ml, targets_ml)
    assert abs(float(loss_bin) - float(ref_bin)) < 1e-4, (loss_bin, ref_bin)
    assert abs(float(loss_ce) - float(ref_ce)) < 1e-4, (loss_ce, ref_ce)
    assert abs(float(loss_ml) - float(ref_ml)) < 1e-4, (loss_ml, ref_ml)
    for v in (loss_bin, loss_ce, loss_ml):
        assert v.shape == () and v.dtype == jnp.float32 and bool(jnp.isfinite(v))

    print("KERNEL_OK")
</pallas_src>

<mosaic_0001>
module attributes {stable_mosaic.version = 11 : i64} {
  func.func @_bce_loss_kernel(%arg0: i32, %arg1: memref<8x128xf32, #tpu.memory_space<vmem>>, %arg2: memref<8x128xf32, #tpu.memory_space<vmem>>, %arg3: memref<1x1xf32, #tpu.memory_space<vmem>>, %arg4: memref<1x1xf32, #tpu.memory_space<vmem>>, %arg5: memref<1x1xf32, #tpu.memory_space<vmem>>) attributes {dimension_semantics = [#tpu.dimension_semantics<arbitrary>], iteration_bounds = array<i64: 4>, scalar_prefetch = 0 : i64, scratch_operands = 2 : i64, tpu.core_type = #tpu.core_type<tc>, window_params = [{transform_indices = @transform_0, window_bounds = array<i64: 8, 128>}, {transform_indices = @transform_1, window_bounds = array<i64: 8, 128>}, {pipeline_mode = #tpu.pipeline_mode<synchronous>, transform_indices = @transform_2, window_bounds = array<i64: 1, 1>}]} {
    %c0_i32 = arith.constant 0 : i32
    %0 = arith.cmpi eq, %arg0, %c0_i32 : i32
    %1 = arith.extui %0 : i1 to i32
    %c0_i32_0 = arith.constant 0 : i32
    %2 = arith.cmpi ne, %1, %c0_i32_0 : i32
    scf.if %2 {
      %cst_22 = arith.constant 0.000000e+00 : f32
      %52 = vector.broadcast %cst_22 : f32 to vector<1x1xf32>
      %c0_23 = arith.constant 0 : index
      %c0_24 = arith.constant 0 : index
      %53 = vector.load %arg4[%c0_23, %c0_24] : memref<1x1xf32, #tpu.memory_space<vmem>>, vector<1x1xf32>
      tpu.vector_store %arg4[%c0_23, %c0_24], %52 {strides = array<i32>} : memref<1x1xf32, #tpu.memory_space<vmem>>, vector<1x1xf32>,
      %cst_25 = arith.constant 0.000000e+00 : f32
      %54 = vector.broadcast %cst_25 : f32 to vector<1x1xf32>
      %c0_26 = arith.constant 0 : index
      %c0_27 = arith.constant 0 : index
      %55 = vector.load %arg5[%c0_26, %c0_27] : memref<1x1xf32, #tpu.memory_space<vmem>>, vector<1x1xf32>
      tpu.vector_store %arg5[%c0_26, %c0_27], %54 {strides = array<i32>} : memref<1x1xf32, #tpu.memory_space<vmem>>, vector<1x1xf32>,
    } else {
    }
    %c0 = arith.constant 0 : index
    %c0_1 = arith.constant 0 : index
    %3 = vector.load %arg1[%c0, %c0_1] : memref<8x128xf32, #tpu.memory_space<vmem>>, vector<8x128xf32>
    %c0_2 = arith.constant 0 : index
    %c0_3 = arith.constant 0 : index
    %4 = vector.load %arg2[%c0_2, %c0_3] : memref<8x128xf32, #tpu.memory_space<vmem>>, vector<8x128xf32>
    %c8_i32 = arith.constant 8 : i32
    %5 = arith.muli %arg0, %c8_i32 : i32
    %6 = tpu.iota {dimensions = array<i32: 0>} : vector<8x128xi32>
    %7 = vector.broadcast %5 : i32 to vector<8x128xi32>
    %8 = arith.addi %7, %6 : vector<8x128xi32>
    %9 = tpu.iota {dimensions = array<i32: 1>} : vector<8x128xi32>
    %c32_i32 = arith.constant 32 : i32
    %10 = vector.broadcast %c32_i32 : i32 to vector<8x128xi32>
    %11 = arith.cmpi slt, %8, %10 : vector<8x128xi32>
    %c1_i32 = arith.constant 1 : i32
    %12 = vector.broadcast %c1_i32 : i32 to vector<8x128xi32>
    %13 = arith.cmpi slt, %9, %12 : vector<8x128xi32>
    %14 = arith.andi %11, %13 : vector<8x128xi1>
    %cst = arith.constant 0.000000e+00 : f32
    %15 = vector.broadcast %cst : f32 to vector<8x128xf32>
    %16 = arith.select %14, %3, %15 : vector<8x128xi1>, vector<8x128xf32>
    %cst_4 = arith.constant 0.000000e+00 : f32
    %17 = vector.broadcast %cst_4 : f32 to vector<8x128xf32>
    %18 = arith.select %14, %4, %17 : vector<8x128xi1>, vector<8x128xf32>
    %cst_5 = arith.constant 0.000000e+00 : f32
    %19 = vector.broadcast %cst_5 : f32 to vector<8x128xf32>
    %20 = arith.maximumf %16, %19 : vector<8x128xf32>
    %21 = arith.mulf %16, %18 : vector<8x128xf32>
    %22 = arith.subf %20, %21 : vector<8x128xf32>
    %23 = math.absf %16 : vector<8x128xf32>
    %cst_6 = arith.constant 0.000000e+00 : f32
    %24 = vector.broadcast %cst_6 : f32 to vector<8x128xf32>
    %25 = arith.subf %24, %23 : vector<8x128xf32>
    %26 = math.exp %25 : vector<8x128xf32>
    %cst_7 = arith.constant 1.000000e+00 : f32
    %27 = vector.broadcast %cst_7 : f32 to vector<8x128xf32>
    %28 = arith.addf %27, %26 : vector<8x128xf32>
    %29 = math.log %28 : vector<8x128xf32>
    %30 = arith.addf %22, %29 : vector<8x128xf32>
    %cst_8 = arith.constant 0.000000e+00 : f32
    %31 = vector.broadcast %cst_8 : f32 to vector<8x128xf32>
    %32 = arith.select %14, %30, %31 : vector<8x128xi1>, vector<8x128xf32>
    %c0_9 = arith.constant 0 : index
    %c0_10 = arith.constant 0 : index
    %33 = vector.load %arg4[%c0_9, %c0_10] : memref<1x1xf32, #tpu.memory_space<vmem>>, vector<1x1xf32>
    %cst_11 = arith.constant dense<0.000000e+00> : vector<8xf32>
    %34 = vector.multi_reduction <add>, %32, %cst_11 [1] : vector<8x128xf32> to vector<8xf32>
    %35 = vector.shape_cast %34 : vector<8xf32> to vector<8x1xf32>
    %cst_12 = arith.constant dense<0.000000e+00> : vector<1xf32>
    %36 = vector.multi_reduction <add>, %35, %cst_12 [0] : vector<8x1xf32> to vector<1xf32>
    %37 = vector.shape_cast %36 : vector<1xf32> to vector<1x1xf32>
    %38 = arith.addf %33, %37 : vector<1x1xf32>
    %c0_13 = arith.constant 0 : index
    %c0_14 = arith.constant 0 : index
    %39 = vector.load %arg4[%c0_13, %c0_14] : memref<1x1xf32, #tpu.memory_space<vmem>>, vector<1x1xf32>
    tpu.vector_store %arg4[%c0_13, %c0_14], %38 {strides = array<i32>} : memref<1x1xf32, #tpu.memory_space<vmem>>, vector<1x1xf32>,
    %c0_15 = arith.constant 0 : index
    %c0_16 = arith.constant 0 : index
    %40 = vector.load %arg5[%c0_15, %c0_16] : memref<1x1xf32, #tpu.memory_space<vmem>>, vector<1x1xf32>
    %41 = arith.extui %14 : vector<8x128xi1> to vector<8x128xi32>
    %42 = arith.sitofp %41 : vector<8x128xi32> to vector<8x128xf32>
    %cst_17 = arith.constant dense<0.000000e+00> : vector<8xf32>
    %43 = vector.multi_reduction <add>, %42, %cst_17 [1] : vector<8x128xf32> to vector<8xf32>
    %44 = vector.shape_cast %43 : vector<8xf32> to vector<8x1xf32>
    %cst_18 = arith.constant dense<0.000000e+00> : vector<1xf32>
    %45 = vector.multi_reduction <add>, %44, %cst_18 [0] : vector<8x1xf32> to vector<1xf32>
    %46 = vector.shape_cast %45 : vector<1xf32> to vector<1x1xf32>
    %47 = arith.addf %40, %46 : vector<1x1xf32>
    %c0_19 = arith.constant 0 : index
    %c0_20 = arith.constant 0 : index
    %48 = vector.load %arg5[%c0_19, %c0_20] : memref<1x1xf32, #tpu.memory_space<vmem>>, vector<1x1xf32>
    tpu.vector_store %arg5[%c0_19, %c0_20], %47 {strides = array<i32>} : memref<1x1xf32, #tpu.memory_space<vmem>>, vector<1x1xf32>,
    %c3_i32 = arith.constant 3 : i32
    %49 = arith.cmpi eq, %arg0, %c3_i32 : i32
    %50 = arith.extui %49 : i1 to i32
    %c0_i32_21 = arith.constant 0 : i32
    %51 = arith.cmpi ne, %50, %c0_i32_21 : i32
    scf.if %51 {
      %c0_22 = arith.constant 0 : index
      %c0_23 = arith.constant 0 : index
      %52 = vector.load %arg4[%c0_22, %c0_23] : memref<1x1xf32, #tpu.memory_space<vmem>>, vector<1x1xf32>
      %c0_24 = arith.constant 0 : index
      %c0_25 = arith.constant 0 : index
      %53 = vector.load %arg5[%c0_24, %c0_25] : memref<1x1xf32, #tpu.memory_space<vmem>>, vector<1x1xf32>
      %54 = arith.divf %52, %53 : vector<1x1xf32>
      %c0_26 = arith.constant 0 : index
      %c0_27 = arith.constant 0 : index
      %55 = vector.load %arg3[%c0_26, %c0_27] : memref<1x1xf32, #tpu.memory_space<vmem>>, vector<1x1xf32>
      tpu.vector_store %arg3[%c0_26, %c0_27], %54 {strides = array<i32>} : memref<1x1xf32, #tpu.memory_space<vmem>>, vector<1x1xf32>,
    } else {
    }
    return
  }
  func.func @transform_0(%arg0: i32) -> (i32, i32) {
    %c0_i32 = arith.constant 0 : i32
    %c0_i32_0 = arith.constant 0 : i32
    return %arg0, %c0_i32 : i32, i32
  }
  func.func @transform_1(%arg0: i32) -> (i32, i32) {
    %c0_i32 = arith.constant 0 : i32
    %c0_i32_0 = arith.constant 0 : i32
    return %arg0, %c0_i32 : i32, i32
  }
  func.func @transform_2(%arg0: i32) -> (i32, i32) {
    %c0_i32 = arith.constant 0 : i32
    %c0_i32_0 = arith.constant 0 : i32
    %c0_i32_1 = arith.constant 0 : i32
    return %c0_i32, %c0_i32_0 : i32, i32
  }
}

</mosaic_0001>

<llo_original>
// kernel: criterion_forward.1
$region0: #{criterion_forward.1}
  #allocation0 [shape = 'u32[]', space=smem, size = 0x4, offset = 0x4, fixed_abs, tag = 'smem constant byte address 0x4 - core index']
  #allocation1 [shape = 'u32[144,128]{1,0:T(1,128)}', space=vmem, size = 0x12000, scoped, tag = 'internal scratch']
  #allocation2 [shape = 'f32[1,1]{1,0:T(1,128)}', space=vmem, size = 0x200, scoped, tag = 'scratch operand']
  #allocation3 [shape = 'f32[1,1]{1,0:T(1,128)}', space=vmem, size = 0x200, scoped, tag = 'scratch operand']
  %s0 = inlined_call_operand.vmem [shape: f32[32,128], index: 0, kind: input, shape index: {}]
  %s1 = inlined_call_operand.vmem [shape: f32[32,128], index: 1, kind: input, shape index: {}]
  %s2 = inlined_call_operand.hbm [shape: f32[1,1], index: 2, kind: output, shape index: {}]
  %s3 = sld [smem:[#allocation0]]
  $region49: #{criterion_forward.1} parent=0
    _
  %s5 = ssub.s32 1, %s3
  %s6 = scalar_select 0, %s5, %s3
  $region1: #{criterion_forward.1} parent=0
    #allocation4 [shape = 'u8[512]{0}', space=vmem, size = 0x400, scoped, tag = 'output window, operand 0, single buffered']
    #allocation5 [shape = 's32[2]{0}', space=sflag, size = 0x8, scoped, tag = 'scoped memory for criterion_forward.1']
    %7 = vsyncpa [#allocation5], 0
    loop: start=0, step=1, limit=6
    $region2: #{criterion_forward.1} parent=1 // loop_pre_header
      _
    $region3: #{criterion_forward.1} parent=1 // loop_header
      %s9 = sphi 0, %s13
      %p10 = scmp.ge.s32.totalorder %s9, 6
      %s19 = sphi 0, %s21
      %s22 = sphi 0, %s19
      %s23 = sphi 0, %s22
      %s39 = sphi 0, %s23
      %s45 = sphi 0, %s47
      %s48 = sphi 0, %s45
      %s49 = sphi 0, %s48
      %s65 = sphi 0, %s49
      %s69 = sphi 0, %s69
      %s71 = sphi 0, %s69
      %s72 = sphi 0, %s71
      %s86 = sphi 0, %s72
    $region4: #{criterion_forward.1} parent=1 // loop_header_branch
      %12 = sbr.rel (%p10) target = $region8
    $region5: #{criterion_forward.1} parent=1 // loop_body
      %s14 = ssub.s32 %s9, 1
      %s15 = ssub.s32 %s9, 2
      %s16 = sadd.s32 %s9, 1
      %s17 = ssub.s32 %s9, %s16
      %p18 = scmp.eq.s32.totalorder %s17, 0
      %s20 = sadd.s32 %s19, 1
      %s21 = scalar_select %p18, %s19, %s20
      %p24 = pneg %p18
      %p25 = scmp.eq.s32.totalorder %s9, 3
      %p26 = por %p24, %p25
      %p27 = scmp.ne.s32.totalorder %s19, %s22
      %p28 = scmp.eq.s32.totalorder %s9, 0
      %p29 = por %p27, %p28
      %p30 = scmp.ne.s32.totalorder %s19, %s22
      %p31 = scmp.eq.s32.totalorder %s14, 3
      %p32 = por %p30, %p31
      %p33 = scmp.ne.s32.totalorder %s22, %s23
      %p34 = scmp.eq.s32.totalorder %s14, 0
      %p35 = por %p33, %p34
      %p36 = scmp.ne.s32.totalorder %s22, %s23
      %p37 = scmp.eq.s32.totalorder %s15, 3
      %p38 = por %p36, %p37
      %p40 = scmp.ne.s32.totalorder %s23, %s39
      %p41 = scmp.eq.s32.totalorder %s15, 0
      %p42 = por %p40, %p41
      %s43 = ssub.s32 %s9, %s16
      %p44 = scmp.eq.s32.totalorder %s43, 0
      %s46 = sadd.s32 %s45, 1
      %s47 = scalar_select %p44, %s45, %s46
      %p50 = pneg %p44
      %p51 = scmp.eq.s32.totalorder %s9, 3
      %p52 = por %p50, %p51
      %p53 = scmp.ne.s32.totalorder %s45, %s48
      %p54 = scmp.eq.s32.totalorder %s9, 0
      %p55 = por %p53, %p54
      %p56 = scmp.ne.s32.totalorder %s45, %s48
      %p57 = scmp.eq.s32.totalorder %s14, 3
      %p58 = por %p56, %p57
      %p59 = scmp.ne.s32.totalorder %s48, %s49
      %p60 = scmp.eq.s32.totalorder %s14, 0
      %p61 = por %p59, %p60
      %p62 = scmp.ne.s32.totalorder %s48, %s49
      %p63 = scmp.eq.s32.totalorder %s15, 3
      %p64 = por %p62, %p63
      %p66 = scmp.ne.s32.totalorder %s49, %s65
      %p67 = scmp.eq.s32.totalorder %s15, 0
      %p68 = por %p66, %p67
      %s70 = sadd.s32 %s69, 1
      %p73 = scmp.eq.s32.totalorder %s9, 3
      %p74 = scmp.ne.s32.totalorder %s69, %s71
      %p75 = scmp.eq.s32.totalorder %s9, 0
      %p76 = por %p74, %p75
      %p77 = scmp.ne.s32.totalorder %s69, %s71
      %p78 = scmp.eq.s32.totalorder %s14, 3
      %p79 = por %p77, %p78
      %p80 = scmp.ne.s32.totalorder %s71, %s72
      %p81 = scmp.eq.s32.totalorder %s14, 0
      %p82 = por %p80, %p81
      %p83 = scmp.ne.s32.totalorder %s71, %s72
      %p84 = scmp.eq.s32.totalorder %s15, 3
      %p85 = por %p83, %p84
      %p87 = scmp.ne.s32.totalorder %s72, %s86
      %p88 = scmp.eq.s32.totalorder %s15, 0
      %p89 = por %p87, %p88
      %p90 = scmp.le.s32.totalorder 1, %s9
      %p91 = scmp.lt.s32.totalorder %s9, 5
      %p92 = pnand %p90, %p91
      %p93 = pneg %p92
      // Predicated region
      $region9: #{criterion_forward.1} parent=5 // pred_check
        _
      $region10: #{criterion_forward.1} parent=5 // pred_check_branch
        %95 = sbr.rel (%p92) target = $region12
      $region11: #{criterion_forward.1} parent=5 // pred_region
        %s96 = ssub.s32 %s9, 1
      $region12: #{criterion_forward.1} parent=5 // pred_fallthru
        _
      %p97 = scmp.lt.s32.totalorder %s9, 4
      // Predicated region
      $region13: #{criterion_forward.1} parent=5 // pred_check
        %p98 = pneg %p97
      $region14: #{criterion_forward.1} parent=5 // pred_check_branch
        %100 = sbr.rel (%p98) target = $region16
      $region15: #{criterion_forward.1} parent=5 // pred_region
        // Predicated region
        $region17: #{criterion_forward.1} parent=15 // pred_check
          %p101 = pneg %p29
        $region18: #{criterion_forward.1} parent=15 // pred_check_branch
          %103 = sbr.rel (%p101) target = $region20
        $region19: #{criterion_forward.1} parent=15 // pred_region
          %p104 = scmp.lt.s32.totalorder %s9, 3
          %s105 = scalar_select %p104, %s9, 3
          %s106 = smul.addr %s105, 8
          %s107 = scalar_lea.vmem %s0, %s106
        $region20: #{criterion_forward.1} parent=15 // pred_fallthru
          _
        // Predicated region
        $region21: #{criterion_forward.1} parent=15 // pred_check
          %p108 = pneg %p55
        $region22: #{criterion_forward.1} parent=15 // pred_check_branch
          %110 = sbr.rel (%p108) target = $region24
        $region23: #{criterion_forward.1} parent=15 // pred_region
          %p111 = scmp.lt.s32.totalorder %s9, 3
          %s112 = scalar_select %p111, %s9, 3
          %s113 = smul.addr %s112, 8
          %s114 = scalar_lea.vmem %s1, %s113
        $region24: #{criterion_forward.1} parent=15 // pred_fallthru
          _
      $region16: #{criterion_forward.1} parent=5 // pred_fallthru
        _
      %p115 = scmp.le.s32.totalorder 1, %s9
      %p116 = scmp.lt.s32.totalorder %s9, 5
      %p117 = pnand %p115, %p116
      %p118 = pneg %p117
      // Predicated region
      $region25: #{criterion_forward.1} parent=5 // pred_check
        _
      $region26: #{criterion_forward.1} parent=5 // pred_check_branch
        %120 = sbr.rel (%p117) target = $region28
      $region27: #{criterion_forward.1} parent=5 // pred_region
        %s121 = ssub.s32 %s9, 1
        %p122 = scmp.lt.s32.totalorder %s14, 3
        %s123 = scalar_select %p122, %s14, 3
        %s124 = smul.addr %s123, 8
        %s125 = scalar_lea.vmem %s0, %s124
        %p126 = pneg %p35
        %p127 = pneg %p32
        %p128 = scmp.lt.s32.totalorder %s14, 3
        %s129 = scalar_select %p128, %s14, 3
        %s130 = smul.addr %s129, 8
        %s131 = scalar_lea.vmem %s1, %s130
        %p132 = pneg %p61
        %p133 = pneg %p58
        %p134 = pneg %p82
        %p135 = pneg %p79
        %p136 = scmp.lt.s32.totalorder %s14, 3
        %s137 = scalar_select %p136, %s14, 3
        %s138 = smul.addr %s137, 8
        %s139 = scalar_lea.vmem %s0, %s138
        %p140 = scmp.lt.s32.totalorder %s14, 3
        %s141 = scalar_select %p140, %s14, 3
        %s142 = smul.addr %s141, 8
        %s143 = scalar_lea.vmem %s1, %s142
        %p144 = scmp.eq.s32.totalorder %s14, 0
        // Predicated region
        $region29: #{criterion_forward.1} parent=27 // pred_check
          %p145 = pneg %p144
        $region30: #{criterion_forward.1} parent=27 // pred_check_branch
          %147 = sbr.rel (%p145) target = $region32
        $region31: #{criterion_forward.1} parent=27 // pred_region
          %vm148 = vcmask 0
          %149 = vst.msk [vmem:[#allocation2] sm:$0x1] %vm148, 0.0
          %150 = vst.msk [vmem:[#allocation3] sm:$0x1] %vm148, 0.0
        $region32: #{criterion_forward.1} parent=27 // pred_fallthru
          _
        %v151 = vld [vmem:[%s139] sm:$0xff]
        %v152 = vld [vmem:[%s143] sm:$0xff]
        %s153 = smul.u32 %s14, 8
        %v154 = vlaneseq
        %v155 = vshrl.u32 %v154, 7
        %v156 = vstv %s153
        %v157 = vadd.s32 %v156, %v155
        %v158 = vlaneseq
        %v159 = vand.u32 %v158, 127
        %vm160 = vcmp.lt.s32.totalorder %v157, 32
        %vm161 = vcmp.lt.s32.totalorder %v159, 1
        %vm162 = vmand %vm160, %vm161
        %v163 = vsel %vm162, %v151, 0.0
        %v164 = vsel %vm162, %v152, 0.0
        %v165 = vmax.f32 %v163, 0.0
        %v166 = vmul.f32 %v163, %v164
        %v167 = vsub.f32 %v165, %v166
        %v168 = vand.u32 2147483647, %v163
        %v169 = vsub.f32 0.0, %v168
        %v170 = vmul.f32 %v169, 1.442695
        %v171 = vpow.pop %v170
        %v172 = vadd.f32 %v171, 1.0
        %v173 = vlog2.pop %v172
        %v174 = vmul.f32 %v173, 0.6931472
        %v175 = vadd.f32 %v167, %v174
        %v176 = vsel %vm162, %v175, 0.0
        %v177 = vld [vmem:[#allocation2] sm:$0x1]
        %178 = vadd.xlane.f32.xlu0 %v176
        %v179 = vpop.xlane.xlu0 %178
        %v180 = vrot.slane %v179, 4
        %v181 = vadd.f32 %v179, %v180
        %v182 = vrot.slane %v181, 2
        %v183 = vadd.f32 %v181, %v182
        %v184 = vrot.slane %v183, 1
        %v185 = vadd.f32 %v183, %v184
        %v186 = vadd.f32 %v177, %v185
        %vm187 = vcmask 0
        %188 = vst.msk [vmem:[#allocation2] sm:$0x1] %vm187, %v186
        %v189 = vld [vmem:[#allocation3] sm:$0x1]
        %v190 = vsel %vm162, 1, 0
        %v191 = vcvt.s32.f32 %v190
        %192 = vadd.xlane.f32.xlu0 %v191
        %v193 = vpop.xlane.xlu0 %192
        %v194 = vrot.slane %v193, 4
        %v195 = vadd.f32 %v193, %v194
        %v196 = vrot.slane %v195, 2
        %v197 = vadd.f32 %v195, %v196
        %v198 = vrot.slane %v197, 1
        %v199 = vadd.f32 %v197, %v198
        %v200 = vadd.f32 %v189, %v199
        %201 = vst.msk [vmem:[#allocation3] sm:$0x1] %vm187, %v200
        %p202 = scmp.eq.s32.totalorder %s14, 3
        // Predicated region
        $region33: #{criterion_forward.1} parent=27 // pred_check
          %p203 = pneg %p202
        $region34: #{criterion_forward.1} parent=27 // pred_check_branch
          %205 = sbr.rel (%p203) target = $region36
        $region35: #{criterion_forward.1} parent=27 // pred_region
          %v206 = vld [vmem:[#allocation2] sm:$0x1]
          %v207 = vld [vmem:[#allocation3] sm:$0x1]
          %v208 = vrcp.pop %v207
          %v209 = vmul.f32 %v206, %v208
          %210 = vst.msk [vmem:[#allocation4] sm:$0x1] %vm187, %v209
        $region36: #{criterion_forward.1} parent=27 // pred_fallthru
          _
        // Predicated region
        $region37: #{criterion_forward.1} parent=27 // pred_check
          %p211 = pneg %p79
        $region38: #{criterion_forward.1} parent=27 // pred_check_branch
          %213 = sbr.rel (%p211) target = $region40
        $region39: #{criterion_forward.1} parent=27 // pred_region
          %s215 = ssub.s32 16, 16
          %216 = vsyncadd [#allocation5], %s215
          %s218 = sshll.u32 [#allocation4], 4
          %s219 = int_to_ptr.vmem [resolvable:$true] %s218
          %221 = dma.vmem_to_hbm [thread:$0]  %s219, 16, %s2, [#allocation5]
        $region40: #{criterion_forward.1} parent=27 // pred_fallthru
          _
        // Predicated region
        $region41: #{criterion_forward.1} parent=27 // pred_check
          %p222 = pneg %p79
        $region42: #{criterion_forward.1} parent=27 // pred_check_branch
          %224 = sbr.rel (%p222) target = $region44
        $region43: #{criterion_forward.1} parent=27 // pred_region
          %225 = dma.done [#allocation5], 16
        $region44: #{criterion_forward.1} parent=27 // pred_fallthru
          _
      $region28: #{criterion_forward.1} parent=5 // pred_fallthru
        _
      %p226 = scmp.le.s32.totalorder 2, %s9
      // Predicated region
      $region45: #{criterion_forward.1} parent=5 // pred_check
        %p227 = pneg %p226
      $region46: #{criterion_forward.1} parent=5 // pred_check_branch
        %229 = sbr.rel (%p227) target = $region48
      $region47: #{criterion_forward.1} parent=5 // pred_region
        %s230 = ssub.s32 %s9, 2
      $region48: #{criterion_forward.1} parent=5 // pred_fallthru
        _
    $region6: #{criterion_forward.1} parent=1 // loop_footer
      %s13 = sadd.s32 1, %s9
    $region7: #{criterion_forward.1} parent=1 // loop_footer_branch
      %8 = sbr.rel target = $region3
    $region8: #{criterion_forward.1} parent=1 // loop_exit
      _
    %231 = vsyncpa [#allocation5], 1
    %s232 = scalar_lea.sflag [#allocation5], 1
    %233 = vsyncpa %s232, 1

</llo_original>
